<compile_context>
chip_gen: v7x
topology: tpu7x:2x2x1
jax: 0.10.0
libtpu: 0.0.40
codegen_flags: <defaults>
</compile_context>

<pallas_src>
import functools
import math

import jax
import jax.numpy as jnp
from jax.experimental import pallas as pl
from jax.experimental.pallas import tpu as pltpu


def _group_mean_mxu(x_f32, m_bf16):
    """Per-group mean of x over groups of C consecutive lanes, broadcast back across the group.

    m_bf16 is a (Cp, Cp) block-diagonal matrix with entries 1/C (exact in bf16: C is a power
    of two).  A bf16 hi/lo split of x keeps ~f32 accuracy while using plain bf16 MXU passes
    (cheap here: the MXU is otherwise idle in this memory-bound kernel).
    """
    x_hi = x_f32.astype(jnp.bfloat16)
    x_lo = (x_f32 - x_hi.astype(jnp.float32)).astype(jnp.bfloat16)
    return (jnp.dot(x_hi, m_bf16, preferred_element_type=jnp.float32)
            + jnp.dot(x_lo, m_bf16, preferred_element_type=jnp.float32))


def _ln_packed_kernel(x_ref, w_ref, b_ref, m_ref, o_ref, *, eps):
    # x_ref: (tr, Cp) lane-dense tile holding G = Cp // C logical rows per 128-lane row.
    x = x_ref[...].astype(jnp.float32)
    m = m_ref[...]                                    # (Cp, Cp) bf16, block-diagonal 1/C
    mu = _group_mean_mxu(x, m)                        # per-group mean, already broadcast
    xc = x - mu
    var = _group_mean_mxu(xc * xc, m)                 # biased variance (divide by C)
    scale = jax.lax.rsqrt(var + eps) * w_ref[...].astype(jnp.float32)
    o_ref[...] = (xc * scale + b_ref[...].astype(jnp.float32)).astype(o_ref.dtype)


def _ln_plain_kernel(x_ref, w_ref, b_ref, o_ref, *, eps):
    # x_ref: (tr, C) tile; normalize over the last (lane) dim.
    x = x_ref[...].astype(jnp.float32)
    mu = jnp.mean(x, axis=-1, keepdims=True)
    xc = x - mu
    var = jnp.mean(xc * xc, axis=-1, keepdims=True)   # biased variance
    scale = jax.lax.rsqrt(var + eps) * w_ref[...].astype(jnp.float32)
    o_ref[...] = (xc * scale + b_ref[...].astype(jnp.float32)).astype(o_ref.dtype)


@functools.partial(jax.jit, static_argnames=("eps",))
def withbias_layernorm(x, weight, bias, *, eps=1e-5):
    """x: (..., C); weight, bias: (C,). Matches torch mean/var(-1, unbiased=False) LayerNorm."""
    orig_shape = x.shape
    C = orig_shape[-1]
    rows = math.prod(orig_shape[:-1])

    itemsize = jnp.dtype(x.dtype).itemsize
    sub = {4: 8, 2: 16, 1: 32}.get(itemsize, 8)       # sublane alignment for the row tile

    # Lane-dense packing: fold G logical rows into one 128-lane row when C divides 128.
    G = 128 // C if (C < 128 and 128 % C == 0) else 1
    if G > 1 and rows % G != 0:
        G = 1                                         # keep the wrapper copy-free
    Cp = G * C
    rows_p = rows // G

    x2 = x.reshape(rows_p, Cp)                        # metadata-only reshape, no HBM traffic
    w2 = jnp.tile(weight, G).reshape(1, Cp)
    b2 = jnp.tile(bias, G).reshape(1, Cp)

    # Row tile: ~1 MiB input block, sublane aligned; cap at ~half the rows so there are at
    # least two grid steps when the data allows it (v7x: 2 TensorCores per chip).
    target_block_bytes = 1 << 20
    tr = max(sub, (target_block_bytes // (Cp * itemsize)) // sub * sub)
    tr = min(tr, max(sub, (((rows_p + 1) // 2) // sub) * sub))
    if tr >= rows_p:
        tr = rows_p                                   # single full-extent block (always legal)
    grid = (pl.cdiv(rows_p, tr),)                     # ragged last block: OOB rows are masked

    block_bytes = tr * Cp * itemsize
    vmem_est = 4 * block_bytes + (Cp * Cp * 2 if G > 1 else 0) + (2 << 20)
    vmem_limit = min(vmem_est, 100 * 1024 * 1024) if vmem_est > 12 * 1024 * 1024 else None
    compiler_params = pltpu.CompilerParams(
        dimension_semantics=("parallel",),
        vmem_limit_bytes=vmem_limit,
    )

    row_spec = pl.BlockSpec((tr, Cp), lambda i: (i, 0))
    par_spec = pl.BlockSpec((1, Cp), lambda i: (0, 0))

    if G > 1:
        gid = jnp.arange(Cp, dtype=jnp.int32) // C
        mean_mat = jnp.where(gid[:, None] == gid[None, :], 1.0 / C, 0.0).astype(jnp.bfloat16)
        kernel = functools.partial(_ln_packed_kernel, eps=eps)
        in_specs = [row_spec, par_spec, par_spec,
                    pl.BlockSpec((Cp, Cp), lambda i: (0, 0))]
        args = (x2, w2, b2, mean_mat)
    else:
        kernel = functools.partial(_ln_plain_kernel, eps=eps)
        in_specs = [row_spec, par_spec, par_spec]
        args = (x2, w2, b2)

    out = pl.pallas_call(
        kernel,
        out_shape=jax.ShapeDtypeStruct((rows_p, Cp), x.dtype),
        grid_spec=pltpu.PrefetchScalarGridSpec(
            num_scalar_prefetch=0,
            grid=grid,
            in_specs=in_specs,
            out_specs=row_spec,
        ),
        compiler_params=compiler_params,
    )(*args)

    return out.reshape(orig_shape)


def _reference(x, weight, bias, eps=1e-5):
    x32 = x.astype(jnp.float32)
    mu = jnp.mean(x32, axis=-1, keepdims=True)
    var = jnp.mean((x32 - mu) ** 2, axis=-1, keepdims=True)
    return ((x32 - mu) / jnp.sqrt(var + eps) * weight + bias).astype(x.dtype)


if __name__ == "__main__":
    key = jax.random.PRNGKey(0)
    k1, k2, k3, k4 = jax.random.split(key, 4)

    # --- lane-packed path: C = 32 (< 128), weights at their __init__ values (ones / zeros) ---
    B, N, C = 2, 128, 32
    x = jax.random.normal(k1, (B, N, C), dtype=jnp.float32)
    w = jnp.ones((C,), dtype=jnp.float32)
    b = jnp.zeros((C,), dtype=jnp.float32)
    y = jax.block_until_ready(withbias_layernorm(x, w, b))
    assert y.shape == x.shape and y.dtype == x.dtype
    assert jnp.allclose(y, _reference(x, w, b), atol=2e-5, rtol=2e-5)

    # --- lane-packed path, non-trivial affine, ragged last row tile (no pad / no slice) ---
    B2, N2, C2 = 2, 76, 32          # rows=152 -> rows_p=38, tr=16 -> ragged last block
    x_r = jax.random.normal(k2, (B2, N2, C2), dtype=jnp.float32)
    w_r = jax.random.normal(k3, (C2,), dtype=jnp.float32)
    b_r = jax.random.normal(k4, (C2,), dtype=jnp.float32)
    y_r = jax.block_until_ready(withbias_layernorm(x_r, w_r, b_r))
    assert jnp.allclose(y_r, _reference(x_r, w_r, b_r), atol=2e-5, rtol=2e-5)

    # --- plain path: C >= 128 (already lane-dense) ---
    B3, N3, C3 = 2, 64, 256
    x_p = jax.random.normal(k1, (B3, N3, C3), dtype=jnp.float32)
    w_p = jnp.ones((C3,), dtype=jnp.float32)
    b_p = jnp.zeros((C3,), dtype=jnp.float32)
    y_p = jax.block_until_ready(withbias_layernorm(x_p, w_p, b_p))
    assert jnp.allclose(y_p, _reference(x_p, w_p, b_p), atol=2e-5, rtol=2e-5)

    print("KERNEL_OK")
</pallas_src>

<mosaic_0001>
module attributes {stable_mosaic.version = 11 : i64} {
  func.func @_ln_packed_kernel(%arg0: i32, %arg1: memref<32x128xf32, #tpu.memory_space<vmem>>, %arg2: memref<1x128xf32, #tpu.memory_space<vmem>>, %arg3: memref<1x128xf32, #tpu.memory_space<vmem>>, %arg4: memref<128x128xbf16, #tpu.memory_space<vmem>>, %arg5: memref<32x128xf32, #tpu.memory_space<vmem>>) attributes {dimension_semantics = [#tpu.dimension_semantics<parallel>], iteration_bounds = array<i64: 2>, scalar_prefetch = 0 : i64, scratch_operands = 0 : i64, tpu.core_type = #tpu.core_type<tc>, window_params = [{transform_indices = @transform_0, window_bounds = array<i64: 32, 128>}, {pipeline_mode = #tpu.pipeline_mode<synchronous>, transform_indices = @transform_1, window_bounds = array<i64: 1, 128>}, {pipeline_mode = #tpu.pipeline_mode<synchronous>, transform_indices = @transform_2, window_bounds = array<i64: 1, 128>}, {pipeline_mode = #tpu.pipeline_mode<synchronous>, transform_indices = @transform_3, window_bounds = array<i64: 128, 128>}, {transform_indices = @transform_4, window_bounds = array<i64: 32, 128>}]} {
    %c0 = arith.constant 0 : index
    %c0_0 = arith.constant 0 : index
    %0 = vector.load %arg1[%c0, %c0_0] : memref<32x128xf32, #tpu.memory_space<vmem>>, vector<32x128xf32>
    %c0_1 = arith.constant 0 : index
    %c0_2 = arith.constant 0 : index
    %1 = vector.load %arg4[%c0_1, %c0_2] : memref<128x128xbf16, #tpu.memory_space<vmem>>, vector<128x128xbf16>
    %2 = arith.truncf %0 : vector<32x128xf32> to vector<32x128xbf16>
    %3 = arith.extf %2 : vector<32x128xbf16> to vector<32x128xf32>
    %4 = arith.subf %0, %3 : vector<32x128xf32>
    %5 = arith.truncf %4 : vector<32x128xf32> to vector<32x128xbf16>
    %cst = arith.constant dense<0.000000e+00> : vector<32x128xf32>
    %6 = tpu.matmul %2, %1, %cst {dimension_numbers = #tpu.dot_dimension_numbers<[1], [0], [0], [1], [0, 0, 1, 1], [], []>} : vector<32x128xbf16>, vector<128x128xbf16>, vector<32x128xf32> -> vector<32x128xf32>
    %cst_3 = arith.constant dense<0.000000e+00> : vector<32x128xf32>
    %7 = tpu.matmul %5, %1, %cst_3 {dimension_numbers = #tpu.dot_dimension_numbers<[1], [0], [0], [1], [0, 0, 1, 1], [], []>} : vector<32x128xbf16>, vector<128x128xbf16>, vector<32x128xf32> -> vector<32x128xf32>
    %8 = arith.addf %6, %7 : vector<32x128xf32>
    %9 = arith.subf %0, %8 : vector<32x128xf32>
    %10 = arith.mulf %9, %9 : vector<32x128xf32>
    %11 = arith.truncf %10 : vector<32x128xf32> to vector<32x128xbf16>
    %12 = arith.extf %11 : vector<32x128xbf16> to vector<32x128xf32>
    %13 = arith.subf %10, %12 : vector<32x128xf32>
    %14 = arith.truncf %13 : vector<32x128xf32> to vector<32x128xbf16>
    %cst_4 = arith.constant dense<0.000000e+00> : vector<32x128xf32>
    %15 = tpu.matmul %11, %1, %cst_4 {dimension_numbers = #tpu.dot_dimension_numbers<[1], [0], [0], [1], [0, 0, 1, 1], [], []>} : vector<32x128xbf16>, vector<128x128xbf16>, vector<32x128xf32> -> vector<32x128xf32>
    %cst_5 = arith.constant dense<0.000000e+00> : vector<32x128xf32>
    %16 = tpu.matmul %14, %1, %cst_5 {dimension_numbers = #tpu.dot_dimension_numbers<[1], [0], [0], [1], [0, 0, 1, 1], [], []>} : vector<32x128xbf16>, vector<128x128xbf16>, vector<32x128xf32> -> vector<32x128xf32>
    %17 = arith.addf %15, %16 : vector<32x128xf32>
    %cst_6 = arith.constant 9.99999974E-6 : f32
    %18 = vector.broadcast %cst_6 : f32 to vector<32x128xf32>
    %19 = arith.addf %17, %18 : vector<32x128xf32>
    %20 = math.rsqrt %19 : vector<32x128xf32>
    %c0_7 = arith.constant 0 : index
    %c0_8 = arith.constant 0 : index
    %21 = vector.load %arg2[%c0_7, %c0_8] : memref<1x128xf32, #tpu.memory_space<vmem>>, vector<1x128xf32>
    %22 = vector.broadcast %21 : vector<1x128xf32> to vector<32x128xf32>
    %23 = arith.mulf %20, %22 : vector<32x128xf32>
    %24 = arith.mulf %9, %23 : vector<32x128xf32>
    %c0_9 = arith.constant 0 : index
    %c0_10 = arith.constant 0 : index
    %25 = vector.load %arg3[%c0_9, %c0_10] : memref<1x128xf32, #tpu.memory_space<vmem>>, vector<1x128xf32>
    %26 = vector.broadcast %25 : vector<1x128xf32> to vector<32x128xf32>
    %27 = arith.addf %24, %26 : vector<32x128xf32>
    %c0_11 = arith.constant 0 : index
    %c0_12 = arith.constant 0 : index
    %28 = vector.load %arg5[%c0_11, %c0_12] : memref<32x128xf32, #tpu.memory_space<vmem>>, vector<32x128xf32>
    tpu.vector_store %arg5[%c0_11, %c0_12], %27 {strides = array<i32>} : memref<32x128xf32, #tpu.memory_space<vmem>>, vector<32x128xf32>,
    return
  }
  func.func @transform_0(%arg0: i32) -> (i32, i32) {
    %c0_i32 = arith.constant 0 : i32
    %c0_i32_0 = arith.constant 0 : i32
    return %arg0, %c0_i32 : i32, i32
  }
  func.func @transform_1(%arg0: i32) -> (i32, i32) {
    %c0_i32 = arith.constant 0 : i32
    %c0_i32_0 = arith.constant 0 : i32
    %c0_i32_1 = arith.constant 0 : i32
    return %c0_i32, %c0_i32_0 : i32, i32
  }
  func.func @transform_2(%arg0: i32) -> (i32, i32) {
    %c0_i32 = arith.constant 0 : i32
    %c0_i32_0 = arith.constant 0 : i32
    %c0_i32_1 = arith.constant 0 : i32
    return %c0_i32, %c0_i32_0 : i32, i32
  }
  func.func @transform_3(%arg0: i32) -> (i32, i32) {
    %c0_i32 = arith.constant 0 : i32
    %c0_i32_0 = arith.constant 0 : i32
    %c0_i32_1 = arith.constant 0 : i32
    return %c0_i32, %c0_i32_0 : i32, i32
  }
  func.func @transform_4(%arg0: i32) -> (i32, i32) {
    %c0_i32 = arith.constant 0 : i32
    %c0_i32_0 = arith.constant 0 : i32
    return %arg0, %c0_i32 : i32, i32
  }
}

</mosaic_0001>

<llo_original>
// kernel: tile.13
$region0: #{tile.13}
  #allocation0 [shape = 's32[1]{0}', space=sflag, size = 0x4, scoped, tag = 'scoped memory for tile.13']
  %s0 = inlined_call_operand.vmem [shape: f32[32], index: 0, kind: input, shape index: {}]
  %s1 = inlined_call_operand.vmem [shape: f32[4,32], index: 1, kind: output, shape index: {}]
  // Predicated region
  $region2: #{tile.13} parent=0 // pred_check
    _
  $region3: #{tile.13} parent=0 // pred_check_branch
    %3 = sbr.rel (0) target = $region5
  $region4: #{tile.13} parent=0 // pred_region
    _
  $region5: #{tile.13} parent=0 // pred_fallthru
    _
  %v4 = vld [vmem:[%s0] ss:$0 sm:$0xff]
  %5 = vst [vmem:[%s1] sm:$0xf] %v4

// kernel: tile.14
$region0: #{tile.14}
  %s0 = inlined_call_operand.vmem [shape: f32[4,32], index: 0, kind: input, shape index: {}]
  %s1 = inlined_call_operand.vmem [shape: f32[1,128], index: 1, kind: output, shape index: {}]
  $region1: #{tile.14} parent=0
    #allocation0 [shape = 'u8[4096]{0}', space=vmem, size = 0x1000, scoped, tag = 'scoped mem for output reshape']
    #allocation1 [shape = 'u8[4096]{0}', space=vmem, size = 0x1000, scoped, tag = 'scoped mem for input reshape']
    %s3 = sshllo.u32 0, 4
    %v4 = vld [vmem:[%s0] sm:%s3]
    %5 = vst [vmem:[#allocation1] sm:%s3] %v4
    %v6 = vld [vmem:[#allocation1] sm:$0x1]
    %vm7 = vcmask 261120
    %8 = vst.msk [vmem:[#allocation0] sm:$0x1] %vm7, %v6
    %s9 = scalar_lea.vmem [#allocation1], 3
    %v10 = vld [vmem:[%s9] sm:$0x1]
    %11 = vrot.lane.b32.xlu0 %v10, 96
    %v12 = vpop.permute.xlu0 %11
    %vm13 = vcmask 1048320
    %14 = vst.msk [vmem:[#allocation0] sm:$0x1] %vm13, %v12
    %s15 = scalar_lea.vmem [#allocation1], 2
    %v16 = vld [vmem:[%s15] sm:$0x1]
    %17 = vrot.lane.b32.xlu0 %v16, 64
    %v18 = vpop.permute.xlu0 %17
    %vm19 = vcmask 785920
    %20 = vst.msk [vmem:[#allocation0] sm:$0x1] %vm19, %v18
    %s21 = scalar_lea.vmem [#allocation1], 1
    %v22 = vld [vmem:[%s21] sm:$0x1]
    %23 = vrot.lane.b32.xlu0 %v22, 32
    %v24 = vpop.permute.xlu0 %23
    %vm25 = vcmask 523520
    %26 = vst.msk [vmem:[#allocation0] sm:$0x1] %vm25, %v24
    %s28 = sshllo.u32 0, 1
    %v30 = vld [vmem:[#allocation0] sm:%s28]
    %s31 = sshllo.u32 0, 1
    %32 = vst [vmem:[%s1] sm:%s31] %v30

// kernel: withbias_layernorm.1
$region0: #{withbias_layernorm.1}
  #allocation0 [shape = 'u32[]', space=smem, size = 0x4, offset = 0x4, fixed_abs, tag = 'smem constant byte address 0x4 - core index']
  #allocation1 [shape = 'u32[144,128]{1,0:T(1,128)}', space=vmem, size = 0x12000, scoped, tag = 'internal scratch']
  %s0 = inlined_call_operand.vmem [shape: f32[64,128], index: 0, kind: input, shape index: {}]
  %s1 = inlined_call_operand.vmem [shape: f32[1,128], index: 1, kind: input, shape index: {}]
  %s2 = inlined_call_operand.vmem [shape: f32[1,128], index: 2, kind: input, shape index: {}]
  %s3 = inlined_call_operand.vmem [shape: bf16[128,128], index: 3, kind: input, shape index: {}]
  %s4 = inlined_call_operand.vmem [shape: f32[64,128], index: 4, kind: output, shape index: {}]
  %s5 = sld [smem:[#allocation0]]
  $region49: #{withbias_layernorm.1} parent=0
    _
  %s7 = ssub.s32 1, %s5
  %s8 = scalar_select 0, %s7, %s5
  loop: start=0, step=1, limit=4
  $region2: #{withbias_layernorm.1} parent=0 // loop_pre_header
    _
  $region3: #{withbias_layernorm.1} parent=0 // loop_header
    %s10 = sphi 0, %s14
    %p11 = scmp.ge.s32.totalorder %s10, 4
    %s20 = sphi 0, %s22
    %s23 = sphi 0, %s20
    %s24 = sphi 0, %s23
    %s40 = sphi 0, %s24
    %s44 = sphi 0, %s44
    %s46 = sphi 0, %s44
    %s47 = sphi 0, %s46
    %s61 = sphi 0, %s47
    %s65 = sphi 0, %s65
    %s67 = sphi 0, %s65
    %s68 = sphi 0, %s67
    %s82 = sphi 0, %s68
    %s86 = sphi 0, %s86
    %s88 = sphi 0, %s86
    %s89 = sphi 0, %s88
    %s103 = sphi 0, %s89
    %s109 = sphi 0, %s111
    %s112 = sphi 0, %s109
    %s113 = sphi 0, %s112
    %s129 = sphi 0, %s113
  $region4: #{withbias_layernorm.1} parent=0 // loop_header_branch
    %13 = sbr.rel (%p11) target = $region8
  $region5: #{withbias_layernorm.1} parent=0 // loop_body
    %s15 = ssub.s32 %s10, 1
    %s16 = ssub.s32 %s10, 2
    %s17 = sadd.s32 %s10, 1
    %s18 = ssub.s32 %s10, %s17
    %p19 = scmp.eq.s32.totalorder %s18, 0
    %s21 = sadd.s32 %s20, 1
    %s22 = scalar_select %p19, %s20, %s21
    %p25 = pneg %p19
    %p26 = scmp.eq.s32.totalorder %s10, 1
    %p27 = por %p25, %p26
    %p28 = scmp.ne.s32.totalorder %s20, %s23
    %p29 = scmp.eq.s32.totalorder %s10, 0
    %p30 = por %p28, %p29
    %p31 = scmp.ne.s32.totalorder %s20, %s23
    %p32 = scmp.eq.s32.totalorder %s15, 1
    %p33 = por %p31, %p32
    %p34 = scmp.ne.s32.totalorder %s23, %s24
    %p35 = scmp.eq.s32.totalorder %s15, 0
    %p36 = por %p34, %p35
    %p37 = scmp.ne.s32.totalorder %s23, %s24
    %p38 = scmp.eq.s32.totalorder %s16, 1
    %p39 = por %p37, %p38
    %p41 = scmp.ne.s32.totalorder %s24, %s40
    %p42 = scmp.eq.s32.totalorder %s16, 0
    %p43 = por %p41, %p42
    %s45 = sadd.s32 %s44, 1
    %p48 = scmp.eq.s32.totalorder %s10, 1
    %p49 = scmp.ne.s32.totalorder %s44, %s46
    %p50 = scmp.eq.s32.totalorder %s10, 0
    %p51 = por %p49, %p50
    %p52 = scmp.ne.s32.totalorder %s44, %s46
    %p53 = scmp.eq.s32.totalorder %s15, 1
    %p54 = por %p52, %p53
    %p55 = scmp.ne.s32.totalorder %s46, %s47
    %p56 = scmp.eq.s32.totalorder %s15, 0
    %p57 = por %p55, %p56
    %p58 = scmp.ne.s32.totalorder %s46, %s47
    %p59 = scmp.eq.s32.totalorder %s16, 1
    %p60 = por %p58, %p59
    %p62 = scmp.ne.s32.totalorder %s47, %s61
    %p63 = scmp.eq.s32.totalorder %s16, 0
    %p64 = por %p62, %p63
    %s66 = sadd.s32 %s65, 1
    %p69 = scmp.eq.s32.totalorder %s10, 1
    %p70 = scmp.ne.s32.totalorder %s65, %s67
    %p71 = scmp.eq.s32.totalorder %s10, 0
    %p72 = por %p70, %p71
    %p73 = scmp.ne.s32.totalorder %s65, %s67
    %p74 = scmp.eq.s32.totalorder %s15, 1
    %p75 = por %p73, %p74
    %p76 = scmp.ne.s32.totalorder %s67, %s68
    %p77 = scmp.eq.s32.totalorder %s15, 0
    %p78 = por %p76, %p77
    %p79 = scmp.ne.s32.totalorder %s67, %s68
    %p80 = scmp.eq.s32.totalorder %s16, 1
    %p81 = por %p79, %p80
    %p83 = scmp.ne.s32.totalorder %s68, %s82
    %p84 = scmp.eq.s32.totalorder %s16, 0
    %p85 = por %p83, %p84
    %s87 = sadd.s32 %s86, 1
    %p90 = scmp.eq.s32.totalorder %s10, 1
    %p91 = scmp.ne.s32.totalorder %s86, %s88
    %p92 = scmp.eq.s32.totalorder %s10, 0
    %p93 = por %p91, %p92
    %p94 = scmp.ne.s32.totalorder %s86, %s88
    %p95 = scmp.eq.s32.totalorder %s15, 1
    %p96 = por %p94, %p95
    %p97 = scmp.ne.s32.totalorder %s88, %s89
    %p98 = scmp.eq.s32.totalorder %s15, 0
    %p99 = por %p97, %p98
    %p100 = scmp.ne.s32.totalorder %s88, %s89
    %p101 = scmp.eq.s32.totalorder %s16, 1
    %p102 = por %p100, %p101
    %p104 = scmp.ne.s32.totalorder %s89, %s103
    %p105 = scmp.eq.s32.totalorder %s16, 0
    %p106 = por %p104, %p105
    %s107 = ssub.s32 %s10, %s17
    %p108 = scmp.eq.s32.totalorder %s107, 0
    %s110 = sadd.s32 %s109, 1
    %s111 = scalar_select %p108, %s109, %s110
    %p114 = pneg %p108
    %p115 = scmp.eq.s32.totalorder %s10, 1
    %p116 = por %p114, %p115
    %p117 = scmp.ne.s32.totalorder %s109, %s112
    %p118 = scmp.eq.s32.totalorder %s10, 0
    %p119 = por %p117, %p118
    %p120 = scmp.ne.s32.totalorder %s109, %s112
    %p121 = scmp.eq.s32.totalorder %s15, 1
    %p122 = por %p120, %p121
    %p123 = scmp.ne.s32.totalorder %s112, %s113
    %p124 = scmp.eq.s32.totalorder %s15, 0
    %p125 = por %p123, %p124
    %p126 = scmp.ne.s32.totalorder %s112, %s113
    %p127 = scmp.eq.s32.totalorder %s16, 1
    %p128 = por %p126, %p127
    %p130 = scmp.ne.s32.totalorder %s113, %s129
    %p131 = scmp.eq.s32.totalorder %s16, 0
    %p132 = por %p130, %p131
    %p133 = scmp.le.s32.totalorder 1, %s10
    %p134 = scmp.lt.s32.totalorder %s10, 3
    %p135 = pnand %p133, %p134
    %p136 = pneg %p135
    // Predicated region
    $region9: #{withbias_layernorm.1} parent=5 // pred_check
      _
    $region10: #{withbias_layernorm.1} parent=5 // pred_check_branch
      %138 = sbr.rel (%p135) target = $region12
    $region11: #{withbias_layernorm.1} parent=5 // pred_region
      %s139 = ssub.s32 %s10, 1
      // Predicated region
      $region13: #{withbias_layernorm.1} parent=11 // pred_check
        %p140 = pneg %p57
      $region14: #{withbias_layernorm.1} parent=11 // pred_check_branch
        %142 = sbr.rel (%p140) target = $region16
      $region15: #{withbias_layernorm.1} parent=11 // pred_region
        _
      $region16: #{withbias_layernorm.1} parent=11 // pred_fallthru
        _
      // Predicated region
      $region17: #{withbias_layernorm.1} parent=11 // pred_check
        %p143 = pneg %p78
      $region18: #{withbias_layernorm.1} parent=11 // pred_check_branch
        %145 = sbr.rel (%p143) target = $region20
      $region19: #{withbias_layernorm.1} parent=11 // pred_region
        _
      $region20: #{withbias_layernorm.1} parent=11 // pred_fallthru
        _
      // Predicated region
      $region21: #{withbias_layernorm.1} parent=11 // pred_check
        %p146 = pneg %p99
      $region22: #{withbias_layernorm.1} parent=11 // pred_check_branch
        %148 = sbr.rel (%p146) target = $region24
      $region23: #{withbias_layernorm.1} parent=11 // pred_region
        _
      $region24: #{withbias_layernorm.1} parent=11 // pred_fallthru
        _
    $region12: #{withbias_layernorm.1} parent=5 // pred_fallthru
      _
    %p149 = scmp.lt.s32.totalorder %s10, 2
    // Predicated region
    $region25: #{withbias_layernorm.1} parent=5 // pred_check
      %p150 = pneg %p149
    $region26: #{withbias_layernorm.1} parent=5 // pred_check_branch
      %152 = sbr.rel (%p150) target = $region28
    $region27: #{withbias_layernorm.1} parent=5 // pred_region
      // Predicated region
      $region29: #{withbias_layernorm.1} parent=27 // pred_check
        %p153 = pneg %p30
      $region30: #{withbias_layernorm.1} parent=27 // pred_check_branch
        %155 = sbr.rel (%p153) target = $region32
      $region31: #{withbias_layernorm.1} parent=27 // pred_region
        %s156 = smul.u32 4, %s10
        %p157 = scmp.lt.s32.totalorder %s156, 7
        %s158 = scalar_select %p157, %s156, 7
        %s159 = smul.addr %s158, 8
        %s160 = scalar_lea.vmem %s0, %s159
        %s161 = smul.u32 4, %s10
      $region32: #{withbias_layernorm.1} parent=27 // pred_fallthru
        _
    $region28: #{withbias_layernorm.1} parent=5 // pred_fallthru
      _
    %p162 = scmp.le.s32.totalorder 1, %s10
    %p163 = scmp.lt.s32.totalorder %s10, 3
    %p164 = pnand %p162, %p163
    %p165 = pneg %p164
    // Predicated region
    $region33: #{withbias_layernorm.1} parent=5 // pred_check
      _
    $region34: #{withbias_layernorm.1} parent=5 // pred_check_branch
      %167 = sbr.rel (%p164) target = $region36
    $region35: #{withbias_layernorm.1} parent=5 // pred_region
      %s168 = ssub.s32 %s10, 1
      %s169 = smul.u32 4, %s15
      %p170 = scmp.lt.s32.totalorder %s169, 7
      %s171 = scalar_select %p170, %s169, 7
      %s172 = smul.addr %s171, 8
      %s173 = scalar_lea.vmem %s0, %s172
      %p174 = pneg %p36
      %p175 = pneg %p33
      %p176 = pneg %p57
      %p177 = pneg %p54
      %p178 = pneg %p78
      %p179 = pneg %p75
      %p180 = pneg %p99
      %p181 = pneg %p96
      %p182 = pneg %p125
      %p183 = pneg %p122
      %s184 = smul.u32 4, %s15
      %p185 = scmp.lt.s32.totalorder %s184, 7
      %s186 = scalar_select %p185, %s184, 7
      %s187 = smul.addr %s186, 8
      %s188 = scalar_lea.vmem %s4, %s187
      %s189 = smul.u32 4, %s15
      %p190 = scmp.lt.s32.totalorder %s189, 7
      %s191 = scalar_select %p190, %s189, 7
      %s192 = smul.addr %s191, 8
      %s193 = scalar_lea.vmem %s0, %s192
      %s194 = smul.u32 4, %s15
      %s195 = smul.u32 4, %s15
      %p196 = scmp.lt.s32.totalorder %s195, 7
      %s197 = scalar_select %p196, %s195, 7
      %s198 = smul.addr %s197, 8
      %s199 = scalar_lea.vmem %s4, %s198
      %s200 = smul.u32 4, %s15
      %v202 = vld [vmem:[%s193] sm:$0xff]
      %v203 = vld [vmem:[%s193 + $0x8] sm:$0xff]
      %v204 = vld [vmem:[%s193 + $0x10] sm:$0xff]
      %v205 = vld [vmem:[%s193 + $0x18] sm:$0xff]
      %v206 = vld [vmem:[%s3] sm:$0xf]
      %v207 = vld [vmem:[%s3 + $0x4] sm:$0xf]
      %v208 = vld [vmem:[%s3 + $0x8] sm:$0xf]
      %v209 = vld [vmem:[%s3 + $0xc] sm:$0xf]
      %v210 = vld [vmem:[%s3 + $0x10] sm:$0xf]
      %v211 = vld [vmem:[%s3 + $0x14] sm:$0xf]
      %v212 = vld [vmem:[%s3 + $0x18] sm:$0xf]
      %v213 = vld [vmem:[%s3 + $0x1c] sm:$0xf]
      %v214 = vld [vmem:[%s3 + $0x20] sm:$0xf]
      %v215 = vld [vmem:[%s3 + $0x24] sm:$0xf]
      %v216 = vld [vmem:[%s3 + $0x28] sm:$0xf]
      %v217 = vld [vmem:[%s3 + $0x2c] sm:$0xf]
      %v218 = vld [vmem:[%s3 + $0x30] sm:$0xf]
      %v219 = vld [vmem:[%s3 + $0x34] sm:$0xf]
      %v220 = vld [vmem:[%s3 + $0x38] sm:$0xf]
      %v221 = vld [vmem:[%s3 + $0x3c] sm:$0xf]
      %v222 = vpack.c.bf16 %v203, %v202
      %v223 = vpack.c.bf16 %v205, %v204
      %v224 = vunpack.c.l.bf16 %v222
      %v225 = vunpack.c.h.bf16 %v222
      %v226 = vunpack.c.l.bf16 %v223
      %v227 = vunpack.c.h.bf16 %v223
      %v228 = vsub.f32 %v202, %v224
      %v229 = vsub.f32 %v203, %v225
      %v230 = vsub.f32 %v204, %v226
      %v231 = vsub.f32 %v205, %v227
      %v232 = vpack.c.bf16 %v229, %v228
      %v233 = vpack.c.bf16 %v231, %v230
      %v250 = vunpack.c.l.b16 %v206
      %v251 = vunpack.c.l.b16 %v207
      %v252 = vunpack.c.l.b16 %v208
      %v253 = vunpack.c.l.b16 %v209
      %v254 = vunpack.c.l.b16 %v210
      %v255 = vunpack.c.l.b16 %v211
      %v256 = vunpack.c.l.b16 %v212
      %v257 = vunpack.c.l.b16 %v213
      %v258 = vunpack.c.l.b16 %v214
      %v259 = vunpack.c.l.b16 %v215
      %v260 = vunpack.c.l.b16 %v216
      %v261 = vunpack.c.l.b16 %v217
      %v262 = vunpack.c.l.b16 %v218
      %v263 = vunpack.c.l.b16 %v219
      %v264 = vunpack.c.l.b16 %v220
      %v265 = vunpack.c.l.b16 %v221
      %v266 = vpack.c.b16 %v251, %v250
      %v267 = vpack.c.b16 %v253, %v252
      %v268 = vpack.c.b16 %v255, %v254
      %v269 = vpack.c.b16 %v257, %v256
      %v270 = vpack.c.b16 %v259, %v258
      %v271 = vpack.c.b16 %v261, %v260
      %v272 = vpack.c.b16 %v263, %v262
      %v273 = vpack.c.b16 %v265, %v264
      %282 = vmatprep.subr.bf16.mxu0 0
      %283 = vmatpush1.bf16.msra.mxu0 %v266
      %284 = vmatprep.subr.bf16.mxu0 0
      %285 = vmatpush1.bf16.msra.mxu0 %v267
      %286 = vmatprep.subr.bf16.mxu0 0
      %287 = vmatpush1.bf16.msra.mxu0 %v268
      %288 = vmatprep.subr.bf16.mxu0 0
      %289 = vmatpush1.bf16.msra.mxu0 %v269
      %290 = vmatprep.subr.bf16.mxu0 0
      %291 = vmatpush1.bf16.msra.mxu0 %v270
      %292 = vmatprep.subr.bf16.mxu0 0
      %293 = vmatpush1.bf16.msra.mxu0 %v271
      %294 = vmatprep.subr.bf16.mxu0 0
      %295 = vmatpush1.bf16.msra.mxu0 %v272
      %296 = vmatprep.subr.bf16.mxu0 0
      %297 = vmatpush1.bf16.msra.mxu0 %v273
      %298 = vmatprep.subr.bf16.mxu0 0
      %299 = vmatpush1.bf16.msra.mxu0 0
      %300 = vmatprep.subr.bf16.mxu0 0
      %301 = vmatpush1.bf16.msra.mxu0 0
      %302 = vmatprep.subr.bf16.mxu0 0
      %303 = vmatpush1.bf16.msra.mxu0 0
      %304 = vmatprep.subr.bf16.mxu0 0
      %305 = vmatpush1.bf16.msra.mxu0 0
      %306 = vmatprep.subr.bf16.mxu0 0
      %307 = vmatpush1.bf16.msra.mxu0 0
      %308 = vmatprep.subr.bf16.mxu0 0
      %309 = vmatpush1.bf16.msra.mxu0 0
      %310 = vmatprep.subr.bf16.mxu0 0
      %311 = vmatpush1.bf16.msra.mxu0 0
      %312 = vmatprep.subr.bf16.mxu0 0
      %313 = vmatpush1.bf16.msra.mxu0 0
      %314 = vmatprep.mubr.bf16.mxu0 0
      %315 = vmatmul.mubr.bf16.gmra.mrb[0].mxu0 %v232
      %v316 = vpop.f32.mrb[0].mxu0
      %v317 = vadd.f32 0.0, %v316
      %v318 = vpop.f32.mrb[0].mxu0
      %v319 = vpop.f32.mrb[0].mxu0
      %v320 = vadd.f32 0.0, %v319
      %v321 = vpop.f32.mrb[0].mxu0
      %322 = vmatprep.mubr.bf16.mxu0 0
      %323 = vmatmul.mubr.bf16.gmra.mrb[0].mxu0 %v233
      %v324 = vpop.f32.mrb[0].mxu0
      %v325 = vadd.f32 0.0, %v324
      %v326 = vpop.f32.mrb[0].mxu0
      %v327 = vpop.f32.mrb[0].mxu0
      %v328 = vadd.f32 0.0, %v327
      %v329 = vpop.f32.mrb[0].mxu0
      %330 = vdwg.mxu0
      %331 = vmatprep.subr.bf16.mxu0 0
      %332 = vmatpush1.bf16.msra.mxu0 %v266
      %333 = vmatprep.subr.bf16.mxu0 0
      %334 = vmatpush1.bf16.msra.mxu0 %v267
      %335 = vmatprep.subr.bf16.mxu0 0
      %336 = vmatpush1.bf16.msra.mxu0 %v268
      %337 = vmatprep.subr.bf16.mxu0 0
      %338 = vmatpush1.bf16.msra.mxu0 %v269
      %339 = vmatprep.subr.bf16.mxu0 0
      %340 = vmatpush1.bf16.msra.mxu0 %v270
      %341 = vmatprep.subr.bf16.mxu0 0
      %342 = vmatpush1.bf16.msra.mxu0 %v271
      %343 = vmatprep.subr.bf16.mxu0 0
      %344 = vmatpush1.bf16.msra.mxu0 %v272
      %345 = vmatprep.subr.bf16.mxu0 0
      %346 = vmatpush1.bf16.msra.mxu0 %v273
      %347 = vmatprep.subr.bf16.mxu0 0
      %348 = vmatpush1.bf16.msra.mxu0 0
      %349 = vmatprep.subr.bf16.mxu0 0
      %350 = vmatpush1.bf16.msra.mxu0 0
      %351 = vmatprep.subr.bf16.mxu0 0
      %352 = vmatpush1.bf16.msra.mxu0 0
      %353 = vmatprep.subr.bf16.mxu0 0
      %354 = vmatpush1.bf16.msra.mxu0 0
      %355 = vmatprep.subr.bf16.mxu0 0
      %356 = vmatpush1.bf16.msra.mxu0 0
      %357 = vmatprep.subr.bf16.mxu0 0
      %358 = vmatpush1.bf16.msra.mxu0 0
      %359 = vmatprep.subr.bf16.mxu0 0
      %360 = vmatpush1.bf16.msra.mxu0 0
      %361 = vmatprep.subr.bf16.mxu0 0
      %362 = vmatpush1.bf16.msra.mxu0 0
      %363 = vmatprep.mubr.bf16.mxu0 0
      %364 = vmatmul.mubr.bf16.gmra.mrb[0].mxu0 %v222
      %v365 = vpop.f32.mrb[0].mxu0
      %v366 = vadd.f32 %v317, %v365
      %v367 = vpop.f32.mrb[0].mxu0
      %v368 = vpop.f32.mrb[0].mxu0
      %v369 = vadd.f32 %v320, %v368
      %v370 = vpop.f32.mrb[0].mxu0
      %371 = vmatprep.mubr.bf16.mxu0 0
      %372 = vmatmul.mubr.bf16.gmra.mrb[0].mxu0 %v223
      %v373 = vpop.f32.mrb[0].mxu0
      %v374 = vadd.f32 %v325, %v373
      %v375 = vpop.f32.mrb[0].mxu0
      %v376 = vpop.f32.mrb[0].mxu0
      %v377 = vadd.f32 %v328, %v376
      %v378 = vpop.f32.mrb[0].mxu0
      %379 = vdwg.mxu0
      %v380 = vsub.f32 %v202, %v366
      %v381 = vsub.f32 %v203, %v369
      %v382 = vsub.f32 %v204, %v374
      %v383 = vsub.f32 %v205, %v377
      %v384 = vmul.f32 %v380, %v380
      %v385 = vmul.f32 %v381, %v381
      %v386 = vmul.f32 %v382, %v382
      %v387 = vmul.f32 %v383, %v383
      %v388 = vpack.c.bf16 %v385, %v384
      %v389 = vpack.c.bf16 %v387, %v386
      %v390 = vunpack.c.l.bf16 %v388
      %v391 = vunpack.c.h.bf16 %v388
      %v392 = vunpack.c.l.bf16 %v389
      %v393 = vunpack.c.h.bf16 %v389
      %v394 = vsub.f32 %v384, %v390
      %v395 = vsub.f32 %v385, %v391
      %v396 = vsub.f32 %v386, %v392
      %v397 = vsub.f32 %v387, %v393
      %v398 = vpack.c.bf16 %v395, %v394
      %v399 = vpack.c.bf16 %v397, %v396
      %400 = vmatprep.subr.bf16.mxu0 0
      %401 = vmatpush1.bf16.msra.mxu0 %v266
      %402 = vmatprep.subr.bf16.mxu0 0
      %403 = vmatpush1.bf16.msra.mxu0 %v267
      %404 = vmatprep.subr.bf16.mxu0 0
      %405 = vmatpush1.bf16.msra.mxu0 %v268
      %406 = vmatprep.subr.bf16.mxu0 0
      %407 = vmatpush1.bf16.msra.mxu0 %v269
      %408 = vmatprep.subr.bf16.mxu0 0
      %409 = vmatpush1.bf16.msra.mxu0 %v270
      %410 = vmatprep.subr.bf16.mxu0 0
      %411 = vmatpush1.bf16.msra.mxu0 %v271
      %412 = vmatprep.subr.bf16.mxu0 0
      %413 = vmatpush1.bf16.msra.mxu0 %v272
      %414 = vmatprep.subr.bf16.mxu0 0
      %415 = vmatpush1.bf16.msra.mxu0 %v273
      %416 = vmatprep.subr.bf16.mxu0 0
      %417 = vmatpush1.bf16.msra.mxu0 0
      %418 = vmatprep.subr.bf16.mxu0 0
      %419 = vmatpush1.bf16.msra.mxu0 0
      %420 = vmatprep.subr.bf16.mxu0 0
      %421 = vmatpush1.bf16.msra.mxu0 0
      %422 = vmatprep.subr.bf16.mxu0 0
      %423 = vmatpush1.bf16.msra.mxu0 0
      %424 = vmatprep.subr.bf16.mxu0 0
      %425 = vmatpush1.bf16.msra.mxu0 0
      %426 = vmatprep.subr.bf16.mxu0 0
      %427 = vmatpush1.bf16.msra.mxu0 0
      %428 = vmatprep.subr.bf16.mxu0 0
      %429 = vmatpush1.bf16.msra.mxu0 0
      %430 = vmatprep.subr.bf16.mxu0 0
      %431 = vmatpush1.bf16.msra.mxu0 0
      %432 = vmatprep.mubr.bf16.mxu0 0
      %433 = vmatmul.mubr.bf16.gmra.mrb[0].mxu0 %v398
      %v434 = vpop.f32.mrb[0].mxu0
      %v435 = vadd.f32 0.0, %v434
      %v436 = vpop.f32.mrb[0].mxu0
      %v437 = vpop.f32.mrb[0].mxu0
      %v438 = vadd.f32 0.0, %v437
      %v439 = vpop.f32.mrb[0].mxu0
      %440 = vmatprep.mubr.bf16.mxu0 0
      %441 = vmatmul.mubr.bf16.gmra.mrb[0].mxu0 %v399
      %v442 = vpop.f32.mrb[0].mxu0
      %v443 = vadd.f32 0.0, %v442
      %v444 = vpop.f32.mrb[0].mxu0
      %v445 = vpop.f32.mrb[0].mxu0
      %v446 = vadd.f32 0.0, %v445
      %v447 = vpop.f32.mrb[0].mxu0
      %448 = vdwg.mxu0
      %449 = vmatprep.subr.bf16.mxu0 0
      %450 = vmatpush1.bf16.msra.mxu0 %v266
      %451 = vmatprep.subr.bf16.mxu0 0
      %452 = vmatpush1.bf16.msra.mxu0 %v267
      %453 = vmatprep.subr.bf16.mxu0 0
      %454 = vmatpush1.bf16.msra.mxu0 %v268
      %455 = vmatprep.subr.bf16.mxu0 0
      %456 = vmatpush1.bf16.msra.mxu0 %v269
      %457 = vmatprep.subr.bf16.mxu0 0
      %458 = vmatpush1.bf16.msra.mxu0 %v270
      %459 = vmatprep.subr.bf16.mxu0 0
      %460 = vmatpush1.bf16.msra.mxu0 %v271
      %461 = vmatprep.subr.bf16.mxu0 0
      %462 = vmatpush1.bf16.msra.mxu0 %v272
      %463 = vmatprep.subr.bf16.mxu0 0
      %464 = vmatpush1.bf16.msra.mxu0 %v273
      %465 = vmatprep.subr.bf16.mxu0 0
      %466 = vmatpush1.bf16.msra.mxu0 0
      %467 = vmatprep.subr.bf16.mxu0 0
      %468 = vmatpush1.bf16.msra.mxu0 0
      %469 = vmatprep.subr.bf16.mxu0 0
      %470 = vmatpush1.bf16.msra.mxu0 0
      %471 = vmatprep.subr.bf16.mxu0 0
      %472 = vmatpush1.bf16.msra.mxu0 0
      %473 = vmatprep.subr.bf16.mxu0 0
      %474 = vmatpush1.bf16.msra.mxu0 0
      %475 = vmatprep.subr.bf16.mxu0 0
      %476 = vmatpush1.bf16.msra.mxu0 0
      %477 = vmatprep.subr.bf16.mxu0 0
      %478 = vmatpush1.bf16.msra.mxu0 0
      %479 = vmatprep.subr.bf16.mxu0 0
      %480 = vmatpush1.bf16.msra.mxu0 0
      %481 = vmatprep.mubr.bf16.mxu0 0
      %482 = vmatmul.mubr.bf16.gmra.mrb[0].mxu0 %v388
      %v483 = vpop.f32.mrb[0].mxu0
      %v484 = vadd.f32 %v435, %v483
      %v485 = vpop.f32.mrb[0].mxu0
      %v486 = vpop.f32.mrb[0].mxu0
      %v487 = vadd.f32 %v438, %v486
      %v488 = vpop.f32.mrb[0].mxu0
      %489 = vmatprep.mubr.bf16.mxu0 0
      %490 = vmatmul.mubr.bf16.gmra.mrb[0].mxu0 %v389
      %v491 = vpop.f32.mrb[0].mxu0
      %v492 = vadd.f32 %v443, %v491
      %v493 = vpop.f32.mrb[0].mxu0
      %v494 = vpop.f32.mrb[0].mxu0
      %v495 = vadd.f32 %v446, %v494
      %v496 = vpop.f32.mrb[0].mxu0
      %497 = vdwg.mxu0
      %v498 = vadd.f32 %v484, 1e-05
      %v499 = vadd.f32 %v487, 1e-05
      %v500 = vadd.f32 %v492, 1e-05
      %v501 = vadd.f32 %v495, 1e-05
      %v502 = vrsqrt.pop %v498
      %v503 = vrsqrt.pop %v499
      %v504 = vrsqrt.pop %v500
      %v505 = vrsqrt.pop %v501
      %v506 = vld [vmem:[%s1] sm:$0x1]
      %v508 = vlaneseq
      %v509 = vshrl.u32 %v508, 7
      %v510 = vsub.s32 0, %v509
      %v511 = vrot.slane %v506, %v510
      %v513 = vmul.f32 %v502, %v511
      %v514 = vmul.f32 %v503, %v511
      %v515 = vmul.f32 %v504, %v511
      %v516 = vmul.f32 %v505, %v511
      %v517 = vmul.f32 %v380, %v513
      %v518 = vmul.f32 %v381, %v514
      %v519 = vmul.f32 %v382, %v515
      %v520 = vmul.f32 %v383, %v516
      %v521 = vld [vmem:[%s2] sm:$0x1]
      %v523 = vlaneseq
      %v524 = vshrl.u32 %v523, 7
      %v525 = vsub.s32 0, %v524
      %v526 = vrot.slane %v521, %v525
      %v528 = vadd.f32 %v517, %v526
      %v529 = vadd.f32 %v518, %v526
      %v530 = vadd.f32 %v519, %v526
      %v531 = vadd.f32 %v520, %v526
      %532 = vst [vmem:[%s199] sm:$0xff] %v528
      %533 = vst [vmem:[%s199 + $0x8] sm:$0xff] %v529
      %534 = vst [vmem:[%s199 + $0x10] sm:$0xff] %v530
      %535 = vst [vmem:[%s199 + $0x18] sm:$0xff] %v531
      %s536 = smul.u32 4, %s15
      %p537 = scmp.lt.s32.totalorder %s536, 7
      %s538 = scalar_select %p537, %s536, 7
      %s539 = smul.addr %s538, 8
      %s540 = scalar_lea.vmem %s4, %s539
      // Predicated region
      $region37: #{withbias_layernorm.1} parent=35 // pred_check
        %p541 = pneg %p122
      $region38: #{withbias_layernorm.1} parent=35 // pred_check_branch
        %543 = sbr.rel (%p541) target = $region40
      $region39: #{withbias_layernorm.1} parent=35 // pred_region
        %s544 = smul.u32 4, %s15
      $region40: #{withbias_layernorm.1} parent=35 // pred_fallthru
        _
    $region36: #{withbias_layernorm.1} parent=5 // pred_fallthru
      _
    %p545 = scmp.le.s32.totalorder 2, %s10
    // Predicated region
    $region41: #{withbias_layernorm.1} parent=5 // pred_check
      %p546 = pneg %p545
    $region42: #{withbias_layernorm.1} parent=5 // pred_check_branch
      %548 = sbr.rel (%p546) target = $region44
    $region43: #{withbias_layernorm.1} parent=5 // pred_region
      %s549 = ssub.s32 %s10, 2
      // Predicated region
      $region45: #{withbias_layernorm.1} parent=43 // pred_check
        %p550 = pneg %p128
      $region46: #{withbias_layernorm.1} parent=43 // pred_check_branch
        %552 = sbr.rel (%p550) target = $region48
      $region47: #{withbias_layernorm.1} parent=43 // pred_region
        %s553 = smul.u32 4, %s16
        %p554 = scmp.lt.s32.totalorder %s553, 7
        %s555 = scalar_select %p554, %s553, 7
        %s556 = smul.addr %s555, 8
        %s557 = scalar_lea.vmem %s4, %s556
      $region48: #{withbias_layernorm.1} parent=43 // pred_fallthru
        _
    $region44: #{withbias_layernorm.1} parent=5 // pred_fallthru
      _
  $region6: #{withbias_layernorm.1} parent=0 // loop_footer
    %s14 = sadd.s32 1, %s10
  $region7: #{withbias_layernorm.1} parent=0 // loop_footer_branch
    %9 = sbr.rel target = $region3
  $region8: #{withbias_layernorm.1} parent=0 // loop_exit
    _

</llo_original>
